<compile_context>
chip_gen: v5e
topology: v5e:2x2
jax: 0.10.0
libtpu: 0.0.40
codegen_flags: <defaults>
</compile_context>

<pallas_src>
import jax
import jax.numpy as jnp
from jax import lax
from jax.experimental import pallas as pl
from jax.experimental.pallas import tpu as pltpu

_EPS2 = 1e-24  # (torch F.normalize eps = 1e-12) squared, applied to |v|^2


# ------------------------------ helpers --------------------------------------

def _round_up(x, m):
    return -(-x // m) * m


def _pick_batch_tile(batch, seq_len, v_pad, h_pad, rows_per_item):
    """Pick the per-grid-step batch tile.

    Preferences (in order):
      1. tile is a multiple of 8 (sublane-aligned blocks),
      2. transient footprint (bf16 one-hot + f32 activations) stays small,
      3. >= 2 grid steps so the "parallel" grid axis can use both TensorCores
         on v7x (2 TC/chip); otherwise take the largest fitting tile.
    """
    budget = 8 * 1024 * 1024  # transient per-tile VMEM budget (bytes)

    def transient(tb):
        m = rows_per_item * tb * seq_len
        return m * v_pad * 2 + m * h_pad * 4 + rows_per_item * tb * h_pad * 4

    cands = [tb for tb in (256, 128, 64, 32, 16, 8)
             if batch % tb == 0 and transient(tb) <= budget]
    for tb in cands:                       # descending: largest tile with >=2 steps
        if batch // tb >= 2:
            return tb
    if cands:
        return cands[0]
    return batch                           # tiny / odd batch: one tile for the whole batch


def _vmem_limit_bytes():
    """Scoped-VMEM limit derived per generation: ~half of physical, capped at 64 MiB.

    v5e/v6e (128 MiB physical) -> 64 MiB; v7x (64 MiB physical) -> 32 MiB.
    """
    try:
        cap = pltpu.get_tpu_info().vmem_capacity_bytes
    except Exception:
        cap = 64 * 1024 * 1024
    return max(16 * 1024 * 1024, min(cap // 2, 64 * 1024 * 1024))


def _compiler_params():
    return pltpu.CompilerParams(
        # batch tiles are independent -> megacore sharding on v7x (2 TCs/chip)
        dimension_semantics=("parallel",),
        vmem_limit_bytes=_vmem_limit_bytes(),
    )


def _gather_maxpool(ids, fused_tbl, rows, seq_len, v_pad, h_pad):
    """Fused (Embedding @ W^T) row gather + max-pool for one batch tile.

    ids:       (rows, seq_len) int32 token ids
    fused_tbl: (v_pad, h_pad) bf16 table, fused_tbl[v] = (E @ W^T)[v] (zero-padded)
    returns    (rows, h_pad) f32 max-pooled features (bias NOT yet added).
    """
    # One-hot MXU gather: products with exact 1.0 entries reproduce the bf16
    # table rows exactly; f32 accumulation keeps the pool/cosine math in f32.
    # TODO(synk): for realistic vocab sizes (V >= ~4k) replace this with a
    # scalar-prefetch / manual-DMA row gather of `fused_tbl`; the one-hot trick
    # scales compute with V and needs the whole table VMEM-resident (a problem
    # on v7x's 64 MiB VMEM long before v5e/v6e's 128 MiB).
    iota_v = lax.broadcasted_iota(jnp.int32, (rows, seq_len, v_pad), 2)
    onehot = (ids[:, :, None] == iota_v).astype(jnp.bfloat16)       # (rows, L, V_pad)
    y = jnp.dot(onehot.reshape(rows * seq_len, v_pad), fused_tbl,
                preferred_element_type=jnp.float32)                 # (rows*L, H_pad)
    # max_pool1d over the sequence axis (bias folded in after the pool).
    return jnp.max(y.reshape(rows, seq_len, h_pad), axis=1)         # (rows, H_pad)


# ------------------------------ kernels ---------------------------------------

def _make_encode_kernel(tb, seq_len, v_pad, h_pad):
    def kernel(ids_ref, tbl_ref, b_ref, out_ref):
        pooled = _gather_maxpool(ids_ref[...], tbl_ref[...], tb, seq_len, v_pad, h_pad)
        # bias after the pool: max_l(y + b) == max_l(y) + b.  Lane-dense store.
        out_ref[...] = pooled + b_ref[...]
    return kernel


def _make_pair_kernel(tb, seq_len, v_pad, h_pad):
    def kernel(ids_ref, tbl_ref, b_ref, dist_ref):
        # ids block layout per tile: [sentence-1 rows (tb)] then [sentence-2
        # rows (tb)] -> ONE stacked (2*tb*L, V_pad) matmul, split by static slices.
        pooled = _gather_maxpool(ids_ref[...], tbl_ref[...], 2 * tb, seq_len, v_pad, h_pad)
        v = pooled + b_ref[...]                       # (2*tb, H_pad)
        v1 = v[:tb, :]
        v2 = v[tb:, :]
        n1 = jnp.sum(v1 * v1, axis=-1, keepdims=True)
        n2 = jnp.sum(v2 * v2, axis=-1, keepdims=True)
        d12 = jnp.sum(v1 * v2, axis=-1, keepdims=True)
        # rsqrt on the EUP (its own VLIW slot) instead of sqrt + divide.
        inv = lax.rsqrt(jnp.maximum(n1, _EPS2)) * lax.rsqrt(jnp.maximum(n2, _EPS2))
        dist_ref[...] = 1.0 - d12 * inv               # (tb, 1) -> minimal writeback
    return kernel


# ------------------------------ JAX wrappers ----------------------------------

def _const_spec(shape):
    # Grid-invariant operand: constant index_map, single-buffered (never re-fetched).
    return pl.BlockSpec(shape, lambda i: (0, 0), pipeline_mode=pl.Buffered(1))


def encode_sentences(token_ids, fused_tbl, bias_pad, hidden):
    """SentenceEncoder.forward: Embedding -> Linear -> max-pool.  Returns (B, H) f32."""
    B, L = token_ids.shape
    v_pad, h_pad = fused_tbl.shape
    tb = _pick_batch_tile(B, L, v_pad, h_pad, rows_per_item=1)
    n_tiles = B // tb
    out = pl.pallas_call(
        _make_encode_kernel(tb, L, v_pad, h_pad),
        out_shape=jax.ShapeDtypeStruct((B, h_pad), jnp.float32),
        grid=(n_tiles,),
        in_specs=[
            pl.BlockSpec((tb, L), lambda i: (i, 0)),   # token ids (natural 2-D tile)
            _const_spec((v_pad, h_pad)),               # bf16 fused table E @ W^T
            _const_spec((1, h_pad)),                   # f32 bias (zero-padded)
        ],
        out_specs=pl.BlockSpec((tb, h_pad), lambda i: (i, 0)),  # lane-dense (…,128)
        compiler_params=_compiler_params(),
    )(token_ids.astype(jnp.int32), fused_tbl, bias_pad)
    return out[:, :hidden]


def pair_cosine_distance(s1, s2, fused_tbl, bias_pad):
    """cosine_distance(encoder(s1), encoder(s2)) in one kernel.  Returns (B,) f32."""
    B, L = s1.shape
    v_pad, h_pad = fused_tbl.shape
    tb = _pick_batch_tile(B, L, v_pad, h_pad, rows_per_item=2)
    n_tiles = B // tb
    # Stack both sentences so each batch tile is one (2*tb*L, V_pad) matmul; per
    # tile the sentence-1 rows come first, then the sentence-2 rows.
    ids = jnp.concatenate(
        [s1.reshape(n_tiles, tb, L), s2.reshape(n_tiles, tb, L)], axis=1)
    ids = ids.reshape(n_tiles * 2 * tb, L).astype(jnp.int32)
    dist = pl.pallas_call(
        _make_pair_kernel(tb, L, v_pad, h_pad),
        out_shape=jax.ShapeDtypeStruct((B, 1), jnp.float32),
        grid=(n_tiles,),
        in_specs=[
            pl.BlockSpec((2 * tb, L), lambda i: (i, 0)),
            _const_spec((v_pad, h_pad)),
            _const_spec((1, h_pad)),
        ],
        out_specs=pl.BlockSpec((tb, 1), lambda i: (i, 0)),
        compiler_params=_compiler_params(),
    )(ids, fused_tbl, bias_pad)
    return dist.reshape(B)


def siamese_forward(params, sentence1, sentence2=None, target=None):
    """Mirrors SiameseNetwork.forward (eval semantics)."""
    E, W, b = params["embedding"], params["weight"], params["bias"]
    V, H = E.shape
    v_pad = _round_up(V, 128)
    h_pad = _round_up(H, 128)
    # Fold the Linear into the embedding table ONCE (Embedding -> Linear is
    # linear: onehot @ E @ W^T == onehot @ (E @ W^T)); pad to 128 lanes and a
    # 128-multiple contraction dim; cast to bf16 for the full-rate MXU.
    fused = jnp.dot(E, W.T)                                           # (V, H) f32
    fused_tbl = jnp.pad(fused, ((0, v_pad - V), (0, h_pad - H))).astype(jnp.bfloat16)
    bias_pad = jnp.pad(b.reshape(1, H).astype(jnp.float32), ((0, 0), (0, h_pad - H)))

    if sentence2 is None:
        return encode_sentences(sentence1, fused_tbl, bias_pad, H)    # (B, H)
    dist = pair_cosine_distance(sentence1, sentence2, fused_tbl, bias_pad)  # (B,)
    if target is None:
        return dist
    # nn.CosineEmbeddingLoss (margin=0), computed from the kernel's cosine.
    cos = 1.0 - dist
    y = target.reshape(-1)
    per = jnp.where(y == 1, 1.0 - cos, jnp.maximum(cos, 0.0))
    return jnp.mean(per)


# ------------------------------- reference ------------------------------------

def _reference_outputs(params, s1, s2):
    """Pure-JAX reference using the same bf16-rounded fused table as the kernel."""
    E, W, b = params["embedding"], params["weight"], params["bias"]
    fused = jnp.dot(E, W.T).astype(jnp.bfloat16).astype(jnp.float32)   # (V, H)

    def enc(s):
        return jnp.max(fused[s], axis=1) + b.reshape(1, -1)            # bias after pool

    def nrm(v):
        return v / jnp.maximum(jnp.linalg.norm(v, axis=-1, keepdims=True), 1e-12)

    v1, v2 = enc(s1), enc(s2)
    dist = 1.0 - jnp.sum(nrm(v1) * nrm(v2), axis=-1)
    return v1, dist


# --------------------------------- main ----------------------------------------

if __name__ == "__main__":
    # config = {"hidden_size": 32, "vocab_size": 30, "max_length": 8}
    hidden_size = 32
    vocab_size = 30
    max_length = 8
    batch = 2

    key = jax.random.PRNGKey(0)
    k_emb, k_w, k_b, k_s1, k_s2 = jax.random.split(key, 5)

    embedding = jax.random.normal(k_emb, (vocab_size + 1, hidden_size), jnp.float32) * 0.1
    embedding = embedding.at[0].set(0.0)                     # padding_idx=0
    weight = jax.random.normal(k_w, (hidden_size, hidden_size), jnp.float32) * 0.1
    bias = (jax.random.normal(k_b, (hidden_size,), jnp.float32) * 0.1).reshape(1, hidden_size)
    params = {"embedding": embedding, "weight": weight, "bias": bias}

    s1 = jax.random.randint(k_s1, (batch, max_length), 0, vocab_size + 1, jnp.int32)
    s2 = jax.random.randint(k_s2, (batch, max_length), 0, vocab_size + 1, jnp.int32)
    target = jnp.array([1, -1], jnp.int32)

    # pair path -> cosine distance (B,)
    dist = jax.block_until_ready(siamese_forward(params, s1, s2))
    # single-sentence path -> encoded vector (B, H)
    vec = jax.block_until_ready(siamese_forward(params, s1))
    # loss path -> scalar CosineEmbeddingLoss
    loss = jax.block_until_ready(siamese_forward(params, s1, s2, target))

    ref_vec, ref_dist = _reference_outputs(params, s1, s2)
    assert dist.shape == (batch,)
    assert vec.shape == (batch, hidden_size)
    assert jnp.allclose(dist, ref_dist, atol=1e-4, rtol=1e-4)
    assert jnp.allclose(vec, ref_vec, atol=1e-4, rtol=1e-4)
    assert jnp.isfinite(loss)

    print("KERNEL_OK")
</pallas_src>

<mosaic_0001>
module attributes {stable_mosaic.version = 11 : i64} {
  func.func @kernel(%arg0: i32, %arg1: memref<4x8xi32, #tpu.memory_space<vmem>>, %arg2: memref<128x128xbf16, #tpu.memory_space<vmem>>, %arg3: memref<1x128xf32, #tpu.memory_space<vmem>>, %arg4: memref<2x1xf32, #tpu.memory_space<vmem>>) attributes {dimension_semantics = [#tpu.dimension_semantics<parallel>], iteration_bounds = array<i64: 1>, scalar_prefetch = 0 : i64, scratch_operands = 0 : i64, tpu.core_type = #tpu.core_type<tc>, window_params = [{transform_indices = @transform_0, window_bounds = array<i64: 4, 8>}, {pipeline_mode = #tpu.pipeline_mode<synchronous>, transform_indices = @transform_1, window_bounds = array<i64: 128, 128>}, {pipeline_mode = #tpu.pipeline_mode<synchronous>, transform_indices = @transform_2, window_bounds = array<i64: 1, 128>}, {transform_indices = @transform_3, window_bounds = array<i64: 2, 1>}]} {
    %c0 = arith.constant 0 : index
    %c0_0 = arith.constant 0 : index
    %0 = vector.load %arg1[%c0, %c0_0] : memref<4x8xi32, #tpu.memory_space<vmem>>, vector<4x8xi32>
    %c0_1 = arith.constant 0 : index
    %c0_2 = arith.constant 0 : index
    %1 = vector.load %arg2[%c0_1, %c0_2] : memref<128x128xbf16, #tpu.memory_space<vmem>>, vector<128x128xbf16>
    %2 = tpu.iota {dimensions = array<i32: 2>} : vector<4x8x128xi32>
    %3 = vector.shape_cast %0 : vector<4x8xi32> to vector<4x8x1xi32>
    %4 = vector.broadcast %3 : vector<4x8x1xi32> to vector<4x8x128xi32>
    %5 = arith.cmpi eq, %4, %2 : vector<4x8x128xi32>
    %6 = arith.extui %5 : vector<4x8x128xi1> to vector<4x8x128xi32>
    %7 = arith.sitofp %6 : vector<4x8x128xi32> to vector<4x8x128xf32>
    %8 = arith.truncf %7 : vector<4x8x128xf32> to vector<4x8x128xbf16>
    %9 = vector.shape_cast %8 : vector<4x8x128xbf16> to vector<32x128xbf16>
    %cst = arith.constant dense<0.000000e+00> : vector<32x128xf32>
    %10 = tpu.matmul %9, %1, %cst {dimension_numbers = #tpu.dot_dimension_numbers<[1], [0], [0], [1], [0, 0, 1, 1], [], []>} : vector<32x128xbf16>, vector<128x128xbf16>, vector<32x128xf32> -> vector<32x128xf32>
    %11 = vector.shape_cast %10 : vector<32x128xf32> to vector<4x8x128xf32>
    %cst_3 = arith.constant dense<0xFF800000> : vector<4x128xf32>
    %12 = vector.multi_reduction <maximumf>, %11, %cst_3 [1] : vector<4x8x128xf32> to vector<4x128xf32>
    %c0_4 = arith.constant 0 : index
    %c0_5 = arith.constant 0 : index
    %13 = vector.load %arg3[%c0_4, %c0_5] : memref<1x128xf32, #tpu.memory_space<vmem>>, vector<1x128xf32>
    %14 = vector.broadcast %13 : vector<1x128xf32> to vector<4x128xf32>
    %15 = arith.addf %12, %14 : vector<4x128xf32>
    %16 = vector.extract_strided_slice %15 {offsets = [0, 0], sizes = [2, 128], strides = [1, 1]} : vector<4x128xf32> to vector<2x128xf32>
    %17 = vector.extract_strided_slice %15 {offsets = [2, 0], sizes = [2, 128], strides = [1, 1]} : vector<4x128xf32> to vector<2x128xf32>
    %18 = arith.mulf %16, %16 : vector<2x128xf32>
    %cst_6 = arith.constant dense<0.000000e+00> : vector<2xf32>
    %19 = vector.multi_reduction <add>, %18, %cst_6 [1] : vector<2x128xf32> to vector<2xf32>
    %20 = vector.shape_cast %19 : vector<2xf32> to vector<2x1xf32>
    %21 = arith.mulf %17, %17 : vector<2x128xf32>
    %cst_7 = arith.constant dense<0.000000e+00> : vector<2xf32>
    %22 = vector.multi_reduction <add>, %21, %cst_7 [1] : vector<2x128xf32> to vector<2xf32>
    %23 = vector.shape_cast %22 : vector<2xf32> to vector<2x1xf32>
    %24 = arith.mulf %16, %17 : vector<2x128xf32>
    %cst_8 = arith.constant dense<0.000000e+00> : vector<2xf32>
    %25 = vector.multi_reduction <add>, %24, %cst_8 [1] : vector<2x128xf32> to vector<2xf32>
    %26 = vector.shape_cast %25 : vector<2xf32> to vector<2x1xf32>
    %cst_9 = arith.constant 1.000000e-24 : f32
    %27 = vector.broadcast %cst_9 : f32 to vector<2x1xf32>
    %28 = arith.maximumf %20, %27 : vector<2x1xf32>
    %29 = math.rsqrt %28 : vector<2x1xf32>
    %cst_10 = arith.constant 1.000000e-24 : f32
    %30 = vector.broadcast %cst_10 : f32 to vector<2x1xf32>
    %31 = arith.maximumf %23, %30 : vector<2x1xf32>
    %32 = math.rsqrt %31 : vector<2x1xf32>
    %33 = arith.mulf %29, %32 : vector<2x1xf32>
    %34 = arith.mulf %26, %33 : vector<2x1xf32>
    %cst_11 = arith.constant 1.000000e+00 : f32
    %35 = vector.broadcast %cst_11 : f32 to vector<2x1xf32>
    %36 = arith.subf %35, %34 : vector<2x1xf32>
    %c0_12 = arith.constant 0 : index
    %c0_13 = arith.constant 0 : index
    %37 = vector.load %arg4[%c0_12, %c0_13] : memref<2x1xf32, #tpu.memory_space<vmem>>, vector<2x1xf32>
    tpu.vector_store %arg4[%c0_12, %c0_13], %36 {strides = array<i32>} : memref<2x1xf32, #tpu.memory_space<vmem>>, vector<2x1xf32>,
    return
  }
  func.func @transform_0(%arg0: i32) -> (i32, i32) {
    %c0_i32 = arith.constant 0 : i32
    %c0_i32_0 = arith.constant 0 : i32
    return %arg0, %c0_i32 : i32, i32
  }
  func.func @transform_1(%arg0: i32) -> (i32, i32) {
    %c0_i32 = arith.constant 0 : i32
    %c0_i32_0 = arith.constant 0 : i32
    %c0_i32_1 = arith.constant 0 : i32
    return %c0_i32, %c0_i32_0 : i32, i32
  }
  func.func @transform_2(%arg0: i32) -> (i32, i32) {
    %c0_i32 = arith.constant 0 : i32
    %c0_i32_0 = arith.constant 0 : i32
    %c0_i32_1 = arith.constant 0 : i32
    return %c0_i32, %c0_i32_0 : i32, i32
  }
  func.func @transform_3(%arg0: i32) -> (i32, i32) {
    %c0_i32 = arith.constant 0 : i32
    %c0_i32_0 = arith.constant 0 : i32
    return %arg0, %c0_i32 : i32, i32
  }
}

</mosaic_0001>

<llo_original>
// kernel: tpu_custom_call.1
$region0: #{tpu_custom_call.1}
  #allocation0 [shape = 'u32[]', space=smem, size = 0x4, offset = 0x4, fixed_abs, tag = 'smem constant byte address 0x4 - core index']
  #allocation1 [shape = 'u32[72,128]{1,0:T(1,128)}', space=vmem, size = 0x9000, scoped, tag = 'internal scratch']
  %s0 = inlined_call_operand.hbm [shape: s32[4,8], index: 0, kind: input, shape index: {}]
  %s1 = inlined_call_operand.hbm [shape: bf16[128,128], index: 1, kind: input, shape index: {}]
  %s2 = inlined_call_operand.vmem [shape: f32[1,128], index: 2, kind: input, shape index: {}]
  %s3 = inlined_call_operand.vmem [shape: f32[2,1], index: 3, kind: output, shape index: {}]
  %s4 = sld [smem:[#allocation0]]
  $region30: #{tpu_custom_call.1} parent=0
    _
  %s6 = ssub.s32 1, %s4
  %s7 = scalar_select 0, %s6, %s4
  $region1: #{tpu_custom_call.1} parent=0
    #allocation2 [shape = 'u8[2048]{0}', space=vmem, size = 0x800, scoped, tag = 'input window, operand 0, single buffered']
    #allocation3 [shape = 's32[1]{0}', space=sflag, size = 0x4, scoped, tag = 'scoped memory for tpu_custom_call.1']
    #allocation4 [shape = 'u8[32768]{0}', space=vmem, size = 0x8000, scoped, tag = 'input window, operand 1, single buffered']
    #allocation5 [shape = 's32[1]{0}', space=sflag, size = 0x4, scoped, tag = 'scoped memory for tpu_custom_call.1']
    %8 = vsyncpa [#allocation3], 0
    %9 = vsyncpa [#allocation5], 0
    // Predicated region
    $region2: #{tpu_custom_call.1} parent=1 // pred_check
      _
    $region3: #{tpu_custom_call.1} parent=1 // pred_check_branch
      %11 = sbr.rel (0) target = $region5
    $region4: #{tpu_custom_call.1} parent=1 // pred_region
      %13 = vsyncadd [#allocation3], 0
      %s15 = sshll.u32 %s0, 4
      %s16 = int_to_ptr.hbm [resolvable:$true] %s15
      %s17 = sshll.u32 [#allocation2], 4
      %s18 = int_to_ptr.vmem [resolvable:$true] %s17
      %20 = dma.hbm_to_vmem [thread:$0]  %s16, 64, %s18, [#allocation3]
    $region5: #{tpu_custom_call.1} parent=1 // pred_fallthru
      _
    // Predicated region
    $region6: #{tpu_custom_call.1} parent=1 // pred_check
      _
    $region7: #{tpu_custom_call.1} parent=1 // pred_check_branch
      %22 = sbr.rel (0) target = $region9
    $region8: #{tpu_custom_call.1} parent=1 // pred_region
      %24 = vsyncadd [#allocation5], 0
      %s25 = sshll.u32 %s1, 4
      %s26 = int_to_ptr.hbm [resolvable:$true] %s25
      %s27 = sshll.u32 [#allocation4], 4
      %s28 = int_to_ptr.vmem [resolvable:$true] %s27
      %33 = dma.hbm_to_vmem [thread:$0]  %s26, 1024, %s28, [#allocation5], 64, 64, 4
    $region9: #{tpu_custom_call.1} parent=1 // pred_fallthru
      _
    // Predicated region
    $region10: #{tpu_custom_call.1} parent=1 // pred_check
      _
    $region11: #{tpu_custom_call.1} parent=1 // pred_check_branch
      %35 = sbr.rel (0) target = $region13
    $region12: #{tpu_custom_call.1} parent=1 // pred_region
      _
    $region13: #{tpu_custom_call.1} parent=1 // pred_fallthru
      _
    // Predicated region
    $region14: #{tpu_custom_call.1} parent=1 // pred_check
      _
    $region15: #{tpu_custom_call.1} parent=1 // pred_check_branch
      %37 = sbr.rel (0) target = $region17
    $region16: #{tpu_custom_call.1} parent=1 // pred_region
      %39 = dma.done [#allocation3], 64
    $region17: #{tpu_custom_call.1} parent=1 // pred_fallthru
      _
    // Predicated region
    $region18: #{tpu_custom_call.1} parent=1 // pred_check
      _
    $region19: #{tpu_custom_call.1} parent=1 // pred_check_branch
      %41 = sbr.rel (0) target = $region21
    $region20: #{tpu_custom_call.1} parent=1 // pred_region
      %43 = dma.done [#allocation5], 1024
    $region21: #{tpu_custom_call.1} parent=1 // pred_fallthru
      _
    %v44 = vld [vmem:[#allocation2] sm:$0xf]
    %v45 = vld [vmem:[#allocation4] sm:$0xf]
    %v46 = vld [vmem:[#allocation4 + $0x4] sm:$0xf]
    %v47 = vld [vmem:[#allocation4 + $0x8] sm:$0xf]
    %v48 = vld [vmem:[#allocation4 + $0xc] sm:$0xf]
    %v49 = vld [vmem:[#allocation4 + $0x10] sm:$0xf]
    %v50 = vld [vmem:[#allocation4 + $0x14] sm:$0xf]
    %v51 = vld [vmem:[#allocation4 + $0x18] sm:$0xf]
    %v52 = vld [vmem:[#allocation4 + $0x1c] sm:$0xf]
    %v53 = vld [vmem:[#allocation4 + $0x20] sm:$0xf]
    %v54 = vld [vmem:[#allocation4 + $0x24] sm:$0xf]
    %v55 = vld [vmem:[#allocation4 + $0x28] sm:$0xf]
    %v56 = vld [vmem:[#allocation4 + $0x2c] sm:$0xf]
    %v57 = vld [vmem:[#allocation4 + $0x30] sm:$0xf]
    %v58 = vld [vmem:[#allocation4 + $0x34] sm:$0xf]
    %v59 = vld [vmem:[#allocation4 + $0x38] sm:$0xf]
    %v60 = vld [vmem:[#allocation4 + $0x3c] sm:$0xf]
    %v61 = vlaneseq
    %v62 = vand.u32 %v61, 127
    %v63 = vperm.slane %v44, 0
    %v64 = vlaneseq
    %v65 = vshrl.u32 %v64, 7
    %67 = vset.pattern.permute.xlu0 %v65
    %68 = vperm.xlu0 %67, %v63
    %v69 = vpop.permute.xlu0 %68
    %v70 = vperm.slane %v44, 1
    %v71 = vlaneseq
    %v72 = vshrl.u32 %v71, 7
    %74 = vset.pattern.permute.xlu0 %v72
    %75 = vperm.xlu0 %74, %v70
    %v76 = vpop.permute.xlu0 %75
    %v77 = vperm.slane %v44, 2
    %v78 = vlaneseq
    %v79 = vshrl.u32 %v78, 7
    %81 = vset.pattern.permute.xlu0 %v79
    %82 = vperm.xlu0 %81, %v77
    %v83 = vpop.permute.xlu0 %82
    %v84 = vperm.slane %v44, 3
    %v85 = vlaneseq
    %v86 = vshrl.u32 %v85, 7
    %88 = vset.pattern.permute.xlu0 %v86
    %89 = vperm.xlu0 %88, %v84
    %v90 = vpop.permute.xlu0 %89
    %vm91 = vcmp.eq.s32.totalorder %v69, %v62
    %vm92 = vcmp.eq.s32.totalorder %v76, %v62
    %vm93 = vcmp.eq.s32.totalorder %v83, %v62
    %vm94 = vcmp.eq.s32.totalorder %v90, %v62
    %v95 = vsel %vm91, 1, 0
    %v96 = vsel %vm92, 1, 0
    %v97 = vsel %vm93, 1, 0
    %v98 = vsel %vm94, 1, 0
    %v99 = vcvt.s32.f32 %v95
    %v100 = vcvt.s32.f32 %v96
    %v101 = vcvt.s32.f32 %v97
    %v102 = vcvt.s32.f32 %v98
    %v103 = vpack.c.bf16 %v99, %v99
    %v104 = vpack.c.bf16 %v100, %v100
    %v105 = vpack.c.bf16 %v101, %v101
    %v106 = vpack.c.bf16 %v102, %v102
    %v111 = vunpack.c.l.b16 %v103
    %v112 = vunpack.c.l.b16 %v104
    %v113 = vunpack.c.l.b16 %v105
    %v114 = vunpack.c.l.b16 %v106
    %v115 = vpack.c.b16 %v112, %v111
    %v116 = vpack.c.b16 %v114, %v113
    %v135 = vunpack.c.l.b16 %v45
    %v136 = vunpack.c.l.b16 %v46
    %v137 = vunpack.c.l.b16 %v47
    %v138 = vunpack.c.l.b16 %v48
    %v139 = vunpack.c.l.b16 %v49
    %v140 = vunpack.c.l.b16 %v50
    %v141 = vunpack.c.l.b16 %v51
    %v142 = vunpack.c.l.b16 %v52
    %v143 = vunpack.c.l.b16 %v53
    %v144 = vunpack.c.l.b16 %v54
    %v145 = vunpack.c.l.b16 %v55
    %v146 = vunpack.c.l.b16 %v56
    %v147 = vunpack.c.l.b16 %v57
    %v148 = vunpack.c.l.b16 %v58
    %v149 = vunpack.c.l.b16 %v59
    %v150 = vunpack.c.l.b16 %v60
    %v151 = vpack.c.b16 %v136, %v135
    %v152 = vpack.c.b16 %v138, %v137
    %v153 = vpack.c.b16 %v140, %v139
    %v154 = vpack.c.b16 %v142, %v141
    %v155 = vpack.c.b16 %v144, %v143
    %v156 = vpack.c.b16 %v146, %v145
    %v157 = vpack.c.b16 %v148, %v147
    %v158 = vpack.c.b16 %v150, %v149
    %167 = vmatpush.bf16.msra.mxu0 %v158
    %168 = vmatpush.bf16.msra.mxu0 %v157
    %169 = vmatpush.bf16.msra.mxu0 %v156
    %170 = vmatpush.bf16.msra.mxu0 %v155
    %171 = vmatpush.bf16.msra.mxu0 %v154
    %172 = vmatpush.bf16.msra.mxu0 %v153
    %173 = vmatpush.bf16.msra.mxu0 %v152
    %174 = vmatpush.bf16.msra.mxu0 %v151
    %175 = vmatmul.bf16.gmra.mxu0 %v115
    %v176 = vpop.f32.mrf.mxu0
    %v177 = vadd.f32 0.0, %v176
    %v178 = vpop.f32.mrf.mxu0
    %v179 = vadd.f32 0.0, %v178
    %180 = vmatmul.bf16.gmra.mxu0 %v116
    %v181 = vpop.f32.mrf.mxu0
    %v182 = vadd.f32 0.0, %v181
    %v183 = vpop.f32.mrf.mxu0
    %v184 = vadd.f32 0.0, %v183
    %185 = vdwg.mxu0
    %v186 = vrot.slane %v177, 4
    %v187 = vmax.f32 %v177, %v186
    %v188 = vrot.slane %v187, 2
    %v189 = vmax.f32 %v187, %v188
    %v190 = vrot.slane %v189, 1
    %v191 = vmax.f32 %v189, %v190
    %v192 = vrot.slane %v179, 4
    %v193 = vmax.f32 %v179, %v192
    %v194 = vrot.slane %v193, 2
    %v195 = vmax.f32 %v193, %v194
    %v196 = vrot.slane %v195, 1
    %v197 = vmax.f32 %v195, %v196
    %v198 = vrot.slane %v182, 4
    %v199 = vmax.f32 %v182, %v198
    %v200 = vrot.slane %v199, 2
    %v201 = vmax.f32 %v199, %v200
    %v202 = vrot.slane %v201, 1
    %v203 = vmax.f32 %v201, %v202
    %v204 = vrot.slane %v184, 4
    %v205 = vmax.f32 %v184, %v204
    %v206 = vrot.slane %v205, 2
    %v207 = vmax.f32 %v205, %v206
    %v208 = vrot.slane %v207, 1
    %v209 = vmax.f32 %v207, %v208
    %v210 = vld [vmem:[%s2] sm:$0x1]
    %v212 = vperm.slane %v210, 0
    %v214 = vadd.f32 %v191, %v212
    %v215 = vadd.f32 %v197, %v212
    %v216 = vadd.f32 %v203, %v212
    %v217 = vadd.f32 %v209, %v212
    %v218 = vmul.f32 %v214, %v214
    %v219 = vmul.f32 %v215, %v215
    %v222 = vrot.slane %v219, 7
    %vm223 = vcmask 1041409
    %v224 = vsel %vm223, %v222, %v218
    %vm226 = vcmask 1041408
    %v227 = vsel %vm226, %v224, 0.0
    %228 = vadd.xlane.f32.xlu0 %v227
    %v229 = vpop.xlane.xlu0 %228
    %v230 = vmul.f32 %v216, %v216
    %v231 = vmul.f32 %v217, %v217
    %v234 = vrot.slane %v231, 7
    %v235 = vsel %vm223, %v234, %v230
    %v237 = vsel %vm226, %v235, 0.0
    %238 = vadd.xlane.f32.xlu0 %v237
    %v239 = vpop.xlane.xlu0 %238
    %v240 = vmul.f32 %v214, %v216
    %v241 = vmul.f32 %v215, %v217
    %v244 = vrot.slane %v241, 7
    %v245 = vsel %vm223, %v244, %v240
    %v247 = vsel %vm226, %v245, 0.0
    %248 = vadd.xlane.f32.xlu0 %v247
    %v249 = vpop.xlane.xlu0 %248
    %v250 = vmax.f32 %v229, 1e-24
    %v251 = vrsqrt.pop %v250
    %v252 = vmul.f32 %v251, %v250
    %v253 = vmul.f32 %v252, %v251
    %v254 = vmul.f32 0.5, %v253
    %v255 = vsub.f32 1.5, %v254
    %v256 = vmul.f32 %v251, %v255
    %vm257 = vweird.f32 %v250
    %vm258 = vweird.f32 %v251
    %vm259 = vmor %vm257, %vm258
    %v260 = vsel %vm259, %v251, %v256
    %v261 = vmax.f32 %v239, 1e-24
    %v262 = vrsqrt.pop %v261
    %v263 = vmul.f32 %v262, %v261
    %v264 = vmul.f32 %v263, %v262
    %v265 = vmul.f32 0.5, %v264
    %v266 = vsub.f32 1.5, %v265
    %v267 = vmul.f32 %v262, %v266
    %vm268 = vweird.f32 %v261
    %vm269 = vweird.f32 %v262
    %vm270 = vmor %vm268, %vm269
    %v271 = vsel %vm270, %v262, %v267
    %v272 = vmul.f32 %v260, %v271
    %v273 = vmul.f32 %v249, %v272
    %v274 = vsub.f32 1.0, %v273
    %vm275 = vcmask 1024
    %276 = vst.msk [vmem:[%s3] sm:$0x3] %vm275, %v274
    // Predicated region
    $region22: #{tpu_custom_call.1} parent=1 // pred_check
      _
    $region23: #{tpu_custom_call.1} parent=1 // pred_check_branch
      %278 = sbr.rel (0) target = $region25
    $region24: #{tpu_custom_call.1} parent=1 // pred_region
      _
    $region25: #{tpu_custom_call.1} parent=1 // pred_fallthru
      _
    // Predicated region
    $region26: #{tpu_custom_call.1} parent=1 // pred_check
      _
    $region27: #{tpu_custom_call.1} parent=1 // pred_check_branch
      %280 = sbr.rel (0) target = $region29
    $region28: #{tpu_custom_call.1} parent=1 // pred_region
      _
    $region29: #{tpu_custom_call.1} parent=1 // pred_fallthru
      _
    %281 = vsyncpa [#allocation3], 1
    %282 = vsyncpa [#allocation5], 1

</llo_original>
